<compile_context>
chip_gen: v7x
topology: tpu7x:2x2x1
jax: 0.10.0
libtpu: 0.0.40
codegen_flags: <defaults>
</compile_context>

<pallas_src>
import functools

import jax
import jax.numpy as jnp
from jax import lax
from jax.experimental import pallas as pl
from jax.experimental.pallas import tpu as pltpu


def _round_up(x, m):
    return ((x + m - 1) // m) * m


def rnn_fc_kernel(p_ref, len_ref, w_hh_ref, w_fc_ref, b_fc_ref, out_ref, h_scratch,
                  *, unroll):
    """One grid step = (batch block bb, time block tb); time axis is innermost.

    p_ref    : (Tt, Bb, Hp) bf16  precomputed x_t @ W_ih^T + (b_ih + b_hh)
    len_ref  : (Bb, 1)     int32  sequence lengths (pack_padded_sequence semantics)
    w_hh_ref : (Hp, Hp)    bf16   W_hh^T (zero padded)
    w_fc_ref : (Hp, Op)    bf16   W_fc^T (zero padded, lane-dense output)
    b_fc_ref : (1, Op)     f32
    out_ref  : (Bb, Op)    f32
    h_scratch: (Bb, Hp)    f32    hidden state carried across time blocks
    """
    tb = pl.program_id(1)
    n_steps = p_ref.shape[0]
    t0 = tb * n_steps

    @pl.when(tb == 0)
    def _():
        h_scratch[...] = jnp.zeros_like(h_scratch)

    w_hh = w_hh_ref[...]          # hoist weight load out of the loop
    lens = len_ref[...]           # (Bb, 1) int32

    def step(i, h):
        # h kept in vregs (f32); cast to bf16 only for the MXU.
        h_new = jnp.tanh(
            p_ref[i].astype(jnp.float32)
            + jnp.dot(h.astype(jnp.bfloat16), w_hh,
                      preferred_element_type=jnp.float32))
        valid = (t0 + i) < lens                      # (Bb, 1) packed-seq validity
        return jnp.where(valid, h_new, h)

    h = lax.fori_loop(0, n_steps, step, h_scratch[...], unroll=unroll)
    h_scratch[...] = h                               # hand off to next time block

    @pl.when(tb == pl.num_programs(1) - 1)
    def _():
        logits = (jnp.dot(h.astype(jnp.bfloat16), w_fc_ref[...],
                          preferred_element_type=jnp.float32)
                  + b_fc_ref[...])
        out_ref[...] = logits.astype(out_ref.dtype)


@functools.partial(jax.jit, static_argnames=("time_block", "batch_block"))
def review_classifier_rnn(x_in, x_lengths, params, *, time_block=128, batch_block=None):
    """x_in: (B, T) int32 token ids, x_lengths: (B,) int32 (each >= 1)."""
    emb = params["embedding"]                  # (V, E)
    B, T = x_in.shape
    H = params["w_hh"].shape[0]
    O = params["w_fc"].shape[0]

    # ---- glue: embedding lookup (gather), produced directly time-major ----
    x_emb_tm = jnp.take(emb, x_in.T, axis=0)   # (T, B, E)

    # ---- hoisted input projection: one large fully-parallel matmul, biases folded ----
    bias = (params["b_ih"] + params["b_hh"]).astype(jnp.float32)            # (H,)
    p = jnp.einsum("tbe,eh->tbh", x_emb_tm, params["w_ih"].T,
                   precision="highest") + bias                              # (T, B, H)

    # ---- pad to TPU-friendly (8,128)-aligned, lane-dense shapes ----
    Bp = _round_up(B, 8)
    Hp = _round_up(H, 128)
    Op = _round_up(O, 128)

    if batch_block is None:                    # single batch block by default
        Bb = Bp
    else:                                      # v7x: split batch across TensorCores
        Bb = min(_round_up(batch_block, 8), Bp)
    Bp = _round_up(Bp, Bb)
    n_bb = Bp // Bb

    # Time block: last block (nearly) full (no dead serial tail steps), and the
    # double-buffered bf16 P stream kept inside a conservative VMEM budget.
    p_budget_bytes = 8 * 1024 * 1024
    tt_cap = max(1, min(time_block, T, p_budget_bytes // (2 * Bb * Hp * 2)))
    n_tb = -(-T // tt_cap)
    Tt = -(-T // n_tb)                         # padding <= n_tb - 1 steps total
    Tp = n_tb * Tt
    unroll = Tt if Tt <= 32 else 8

    p = jnp.pad(p, ((0, Tp - T), (0, Bp - B), (0, Hp - H))).astype(jnp.bfloat16)
    lens = jnp.pad(x_lengths.astype(jnp.int32), (0, Bp - B)).reshape(Bp, 1)
    w_hh_t = jnp.pad(params["w_hh"].T, ((0, Hp - H), (0, Hp - H))).astype(jnp.bfloat16)
    w_fc_t = jnp.pad(params["w_fc"].T, ((0, Hp - H), (0, Op - O))).astype(jnp.bfloat16)
    b_fc = jnp.pad(params["b_fc"], (0, Op - O)).reshape(1, Op).astype(jnp.float32)

    grid_spec = pltpu.PrefetchScalarGridSpec(
        num_scalar_prefetch=0,
        grid=(n_bb, n_tb),                                        # (batch, time)
        in_specs=[
            pl.BlockSpec((Tt, Bb, Hp), lambda bb, tb: (tb, bb, 0)),  # P (bf16)
            pl.BlockSpec((Bb, 1), lambda bb, tb: (bb, 0)),           # lengths
            pl.BlockSpec((Hp, Hp), lambda bb, tb: (0, 0)),           # W_hh^T (bf16)
            pl.BlockSpec((Hp, Op), lambda bb, tb: (0, 0)),           # W_fc^T (bf16)
            pl.BlockSpec((1, Op), lambda bb, tb: (0, 0)),            # b_fc
        ],
        out_specs=pl.BlockSpec((Bb, Op), lambda bb, tb: (bb, 0)),
        scratch_shapes=[pltpu.VMEM((Bb, Hp), jnp.float32)],
    )

    out_pad = pl.pallas_call(
        functools.partial(rnn_fc_kernel, unroll=unroll),
        out_shape=jax.ShapeDtypeStruct((Bp, Op), jnp.float32),
        grid_spec=grid_spec,
        compiler_params=pltpu.CompilerParams(
            dimension_semantics=("parallel", "arbitrary"),  # batch parallel, time serial
            vmem_limit_bytes=32 * 1024 * 1024),
    )(p, lens, w_hh_t, w_fc_t, b_fc)

    return out_pad[:B, :O]


def init_params(key, input_dim, embedding_dim, hidden_dim, output_dim, padding_idx):
    ks = jax.random.split(key, 7)
    emb = jax.random.normal(ks[0], (input_dim, embedding_dim), jnp.float32)
    emb = emb.at[padding_idx].set(0.0)                # padding_idx row is zero
    k_rnn = 1.0 / jnp.sqrt(hidden_dim)
    k_fc = 1.0 / jnp.sqrt(hidden_dim)
    params = {
        "embedding": emb,
        "w_ih": jax.random.uniform(ks[1], (hidden_dim, embedding_dim),
                                   jnp.float32, -k_rnn, k_rnn),
        "w_hh": jax.random.uniform(ks[2], (hidden_dim, hidden_dim),
                                   jnp.float32, -k_rnn, k_rnn),
        "b_ih": jax.random.uniform(ks[3], (hidden_dim,), jnp.float32, -k_rnn, k_rnn),
        "b_hh": jax.random.uniform(ks[4], (hidden_dim,), jnp.float32, -k_rnn, k_rnn),
        "w_fc": jax.random.uniform(ks[5], (output_dim, hidden_dim),
                                   jnp.float32, -k_fc, k_fc),
        "b_fc": jax.random.uniform(ks[6], (output_dim,), jnp.float32, -k_fc, k_fc),
    }
    return params


def reference_forward(x_in, x_lengths, params):
    """Pure-JAX f32 reference matching PyTorch packed-RNN semantics (h_n -> fc)."""
    emb = jnp.take(params["embedding"], x_in, axis=0)          # (B, T, E)
    B, T, _ = emb.shape
    H = params["w_hh"].shape[0]
    h = jnp.zeros((B, H), jnp.float32)

    def step(h, t):
        x_t = emb[:, t, :]
        h_new = jnp.tanh(x_t @ params["w_ih"].T + params["b_ih"]
                         + h @ params["w_hh"].T + params["b_hh"])
        valid = (t < x_lengths)[:, None]
        return jnp.where(valid, h_new, h), None

    h, _ = jax.lax.scan(step, h, jnp.arange(T))
    return h @ params["w_fc"].T + params["b_fc"]


if __name__ == "__main__":
    # Small, module-consistent shapes.
    input_dim = 50        # vocab size
    embedding_dim = 32
    hidden_dim = 32
    output_dim = 1
    padding_idx = 0
    B, T = 4, 8

    key = jax.random.PRNGKey(0)
    k_p, k_x = jax.random.split(key)
    params = init_params(k_p, input_dim, embedding_dim, hidden_dim,
                         output_dim, padding_idx)

    # Lengths sorted descending (pack_padded_sequence default enforce_sorted=True),
    # all >= 1.
    x_lengths = jnp.array([8, 6, 5, 3], dtype=jnp.int32)
    tokens = jax.random.randint(k_x, (B, T), 1, input_dim, dtype=jnp.int32)
    # Zero-pad beyond each sequence length with padding_idx.
    pos = jnp.arange(T)[None, :]
    x_in = jnp.where(pos < x_lengths[:, None], tokens, padding_idx)

    out = review_classifier_rnn(x_in, x_lengths, params)
    out = jax.block_until_ready(out)

    ref = reference_forward(x_in, x_lengths, params)
    assert out.shape == (B, output_dim)
    # bf16 MXU operands (f32 accumulation) => slightly looser tolerance than pure f32.
    max_diff = float(jnp.max(jnp.abs(out - ref)))
    assert jnp.allclose(out, ref, atol=5e-2, rtol=5e-2), (out, ref, max_diff)

    print("KERNEL_OK")
</pallas_src>

<mosaic_0001>
module attributes {stable_mosaic.version = 11 : i64} {
  func.func @rnn_fc_kernel(%arg0: i32, %arg1: i32, %arg2: memref<8x8x128xbf16, #tpu.memory_space<vmem>>, %arg3: memref<8x1xi32, #tpu.memory_space<vmem>>, %arg4: memref<128x128xbf16, #tpu.memory_space<vmem>>, %arg5: memref<128x128xbf16, #tpu.memory_space<vmem>>, %arg6: memref<1x128xf32, #tpu.memory_space<vmem>>, %arg7: memref<8x128xf32, #tpu.memory_space<vmem>>, %arg8: memref<8x128xf32, #tpu.memory_space<vmem>>) attributes {dimension_semantics = [#tpu.dimension_semantics<parallel>, #tpu.dimension_semantics<arbitrary>], iteration_bounds = array<i64: 1, 1>, scalar_prefetch = 0 : i64, scratch_operands = 1 : i64, tpu.core_type = #tpu.core_type<tc>, window_params = [{transform_indices = @transform_0, window_bounds = array<i64: 8, 8, 128>}, {transform_indices = @transform_1, window_bounds = array<i64: 8, 1>}, {pipeline_mode = #tpu.pipeline_mode<synchronous>, transform_indices = @transform_2, window_bounds = array<i64: 128, 128>}, {pipeline_mode = #tpu.pipeline_mode<synchronous>, transform_indices = @transform_3, window_bounds = array<i64: 128, 128>}, {pipeline_mode = #tpu.pipeline_mode<synchronous>, transform_indices = @transform_4, window_bounds = array<i64: 1, 128>}, {transform_indices = @transform_5, window_bounds = array<i64: 8, 128>}]} {
    %c8_i32 = arith.constant 8 : i32
    %0 = arith.muli %arg1, %c8_i32 : i32
    %c0_i32 = arith.constant 0 : i32
    %1 = arith.cmpi eq, %arg1, %c0_i32 : i32
    %2 = arith.extui %1 : i1 to i32
    %c0_i32_0 = arith.constant 0 : i32
    %3 = arith.cmpi ne, %2, %c0_i32_0 : i32
    scf.if %3 {
      %cst_35 = arith.constant 0.000000e+00 : f32
      %123 = vector.broadcast %cst_35 : f32 to vector<8x128xf32>
      %c0_36 = arith.constant 0 : index
      %c0_37 = arith.constant 0 : index
      %124 = vector.load %arg8[%c0_36, %c0_37] : memref<8x128xf32, #tpu.memory_space<vmem>>, vector<8x128xf32>
      tpu.vector_store %arg8[%c0_36, %c0_37], %123 {strides = array<i32>} : memref<8x128xf32, #tpu.memory_space<vmem>>, vector<8x128xf32>,
    } else {
    }
    %c0 = arith.constant 0 : index
    %c0_1 = arith.constant 0 : index
    %4 = vector.load %arg4[%c0, %c0_1] : memref<128x128xbf16, #tpu.memory_space<vmem>>, vector<128x128xbf16>
    %c0_2 = arith.constant 0 : index
    %c0_3 = arith.constant 0 : index
    %5 = vector.load %arg3[%c0_2, %c0_3] : memref<8x1xi32, #tpu.memory_space<vmem>>, vector<8x1xi32>
    %c0_4 = arith.constant 0 : index
    %c0_5 = arith.constant 0 : index
    %6 = vector.load %arg8[%c0_4, %c0_5] : memref<8x128xf32, #tpu.memory_space<vmem>>, vector<8x128xf32>
    %c0_i32_6 = arith.constant 0 : i32
    %7 = arith.index_cast %c0_i32_6 : i32 to index
    %c0_7 = arith.constant 0 : index
    %c0_8 = arith.constant 0 : index
    %8 = vector.load %arg2[%7, %c0_7, %c0_8] : memref<8x8x128xbf16, #tpu.memory_space<vmem>>, vector<1x8x128xbf16>
    %9 = vector.shape_cast %8 : vector<1x8x128xbf16> to vector<8x128xbf16>
    %10 = arith.extf %9 : vector<8x128xbf16> to vector<8x128xf32>
    %11 = arith.truncf %6 : vector<8x128xf32> to vector<8x128xbf16>
    %cst = arith.constant dense<0.000000e+00> : vector<8x128xf32>
    %12 = tpu.matmul %11, %4, %cst {dimension_numbers = #tpu.dot_dimension_numbers<[1], [0], [0], [1], [0, 0, 1, 1], [], []>} : vector<8x128xbf16>, vector<128x128xbf16>, vector<8x128xf32> -> vector<8x128xf32>
    %13 = arith.addf %10, %12 : vector<8x128xf32>
    %14 = math.tanh %13 : vector<8x128xf32>
    %15 = arith.addi %0, %c0_i32_6 : i32
    %16 = vector.broadcast %15 : i32 to vector<8x1xi32>
    %17 = arith.cmpi slt, %16, %5 : vector<8x1xi32>
    %18 = vector.shape_cast %17 : vector<8x1xi1> to vector<8x1xi1>
    %19 = vector.broadcast %18 : vector<8x1xi1> to vector<8x128xi1>
    %20 = arith.select %19, %14, %6 : vector<8x128xi1>, vector<8x128xf32>
    %c1_i32 = arith.constant 1 : i32
    %21 = arith.index_cast %c1_i32 : i32 to index
    %c0_9 = arith.constant 0 : index
    %c0_10 = arith.constant 0 : index
    %22 = vector.load %arg2[%21, %c0_9, %c0_10] : memref<8x8x128xbf16, #tpu.memory_space<vmem>>, vector<1x8x128xbf16>
    %23 = vector.shape_cast %22 : vector<1x8x128xbf16> to vector<8x128xbf16>
    %24 = arith.extf %23 : vector<8x128xbf16> to vector<8x128xf32>
    %25 = arith.truncf %20 : vector<8x128xf32> to vector<8x128xbf16>
    %cst_11 = arith.constant dense<0.000000e+00> : vector<8x128xf32>
    %26 = tpu.matmul %25, %4, %cst_11 {dimension_numbers = #tpu.dot_dimension_numbers<[1], [0], [0], [1], [0, 0, 1, 1], [], []>} : vector<8x128xbf16>, vector<128x128xbf16>, vector<8x128xf32> -> vector<8x128xf32>
    %27 = arith.addf %24, %26 : vector<8x128xf32>
    %28 = math.tanh %27 : vector<8x128xf32>
    %29 = arith.addi %0, %c1_i32 : i32
    %30 = vector.broadcast %29 : i32 to vector<8x1xi32>
    %31 = arith.cmpi slt, %30, %5 : vector<8x1xi32>
    %32 = vector.shape_cast %31 : vector<8x1xi1> to vector<8x1xi1>
    %33 = vector.broadcast %32 : vector<8x1xi1> to vector<8x128xi1>
    %34 = arith.select %33, %28, %20 : vector<8x128xi1>, vector<8x128xf32>
    %c2_i32 = arith.constant 2 : i32
    %35 = arith.index_cast %c2_i32 : i32 to index
    %c0_12 = arith.constant 0 : index
    %c0_13 = arith.constant 0 : index
    %36 = vector.load %arg2[%35, %c0_12, %c0_13] : memref<8x8x128xbf16, #tpu.memory_space<vmem>>, vector<1x8x128xbf16>
    %37 = vector.shape_cast %36 : vector<1x8x128xbf16> to vector<8x128xbf16>
    %38 = arith.extf %37 : vector<8x128xbf16> to vector<8x128xf32>
    %39 = arith.truncf %34 : vector<8x128xf32> to vector<8x128xbf16>
    %cst_14 = arith.constant dense<0.000000e+00> : vector<8x128xf32>
    %40 = tpu.matmul %39, %4, %cst_14 {dimension_numbers = #tpu.dot_dimension_numbers<[1], [0], [0], [1], [0, 0, 1, 1], [], []>} : vector<8x128xbf16>, vector<128x128xbf16>, vector<8x128xf32> -> vector<8x128xf32>
    %41 = arith.addf %38, %40 : vector<8x128xf32>
    %42 = math.tanh %41 : vector<8x128xf32>
    %43 = arith.addi %0, %c2_i32 : i32
    %44 = vector.broadcast %43 : i32 to vector<8x1xi32>
    %45 = arith.cmpi slt, %44, %5 : vector<8x1xi32>
    %46 = vector.shape_cast %45 : vector<8x1xi1> to vector<8x1xi1>
    %47 = vector.broadcast %46 : vector<8x1xi1> to vector<8x128xi1>
    %48 = arith.select %47, %42, %34 : vector<8x128xi1>, vector<8x128xf32>
    %c3_i32 = arith.constant 3 : i32
    %49 = arith.index_cast %c3_i32 : i32 to index
    %c0_15 = arith.constant 0 : index
    %c0_16 = arith.constant 0 : index
    %50 = vector.load %arg2[%49, %c0_15, %c0_16] : memref<8x8x128xbf16, #tpu.memory_space<vmem>>, vector<1x8x128xbf16>
    %51 = vector.shape_cast %50 : vector<1x8x128xbf16> to vector<8x128xbf16>
    %52 = arith.extf %51 : vector<8x128xbf16> to vector<8x128xf32>
    %53 = arith.truncf %48 : vector<8x128xf32> to vector<8x128xbf16>
    %cst_17 = arith.constant dense<0.000000e+00> : vector<8x128xf32>
    %54 = tpu.matmul %53, %4, %cst_17 {dimension_numbers = #tpu.dot_dimension_numbers<[1], [0], [0], [1], [0, 0, 1, 1], [], []>} : vector<8x128xbf16>, vector<128x128xbf16>, vector<8x128xf32> -> vector<8x128xf32>
    %55 = arith.addf %52, %54 : vector<8x128xf32>
    %56 = math.tanh %55 : vector<8x128xf32>
    %57 = arith.addi %0, %c3_i32 : i32
    %58 = vector.broadcast %57 : i32 to vector<8x1xi32>
    %59 = arith.cmpi slt, %58, %5 : vector<8x1xi32>
    %60 = vector.shape_cast %59 : vector<8x1xi1> to vector<8x1xi1>
    %61 = vector.broadcast %60 : vector<8x1xi1> to vector<8x128xi1>
    %62 = arith.select %61, %56, %48 : vector<8x128xi1>, vector<8x128xf32>
    %c4_i32 = arith.constant 4 : i32
    %63 = arith.index_cast %c4_i32 : i32 to index
    %c0_18 = arith.constant 0 : index
    %c0_19 = arith.constant 0 : index
    %64 = vector.load %arg2[%63, %c0_18, %c0_19] : memref<8x8x128xbf16, #tpu.memory_space<vmem>>, vector<1x8x128xbf16>
    %65 = vector.shape_cast %64 : vector<1x8x128xbf16> to vector<8x128xbf16>
    %66 = arith.extf %65 : vector<8x128xbf16> to vector<8x128xf32>
    %67 = arith.truncf %62 : vector<8x128xf32> to vector<8x128xbf16>
    %cst_20 = arith.constant dense<0.000000e+00> : vector<8x128xf32>
    %68 = tpu.matmul %67, %4, %cst_20 {dimension_numbers = #tpu.dot_dimension_numbers<[1], [0], [0], [1], [0, 0, 1, 1], [], []>} : vector<8x128xbf16>, vector<128x128xbf16>, vector<8x128xf32> -> vector<8x128xf32>
    %69 = arith.addf %66, %68 : vector<8x128xf32>
    %70 = math.tanh %69 : vector<8x128xf32>
    %71 = arith.addi %0, %c4_i32 : i32
    %72 = vector.broadcast %71 : i32 to vector<8x1xi32>
    %73 = arith.cmpi slt, %72, %5 : vector<8x1xi32>
    %74 = vector.shape_cast %73 : vector<8x1xi1> to vector<8x1xi1>
    %75 = vector.broadcast %74 : vector<8x1xi1> to vector<8x128xi1>
    %76 = arith.select %75, %70, %62 : vector<8x128xi1>, vector<8x128xf32>
    %c5_i32 = arith.constant 5 : i32
    %77 = arith.index_cast %c5_i32 : i32 to index
    %c0_21 = arith.constant 0 : index
    %c0_22 = arith.constant 0 : index
    %78 = vector.load %arg2[%77, %c0_21, %c0_22] : memref<8x8x128xbf16, #tpu.memory_space<vmem>>, vector<1x8x128xbf16>
    %79 = vector.shape_cast %78 : vector<1x8x128xbf16> to vector<8x128xbf16>
    %80 = arith.extf %79 : vector<8x128xbf16> to vector<8x128xf32>
    %81 = arith.truncf %76 : vector<8x128xf32> to vector<8x128xbf16>
    %cst_23 = arith.constant dense<0.000000e+00> : vector<8x128xf32>
    %82 = tpu.matmul %81, %4, %cst_23 {dimension_numbers = #tpu.dot_dimension_numbers<[1], [0], [0], [1], [0, 0, 1, 1], [], []>} : vector<8x128xbf16>, vector<128x128xbf16>, vector<8x128xf32> -> vector<8x128xf32>
    %83 = arith.addf %80, %82 : vector<8x128xf32>
    %84 = math.tanh %83 : vector<8x128xf32>
    %85 = arith.addi %0, %c5_i32 : i32
    %86 = vector.broadcast %85 : i32 to vector<8x1xi32>
    %87 = arith.cmpi slt, %86, %5 : vector<8x1xi32>
    %88 = vector.shape_cast %87 : vector<8x1xi1> to vector<8x1xi1>
    %89 = vector.broadcast %88 : vector<8x1xi1> to vector<8x128xi1>
    %90 = arith.select %89, %84, %76 : vector<8x128xi1>, vector<8x128xf32>
    %c6_i32 = arith.constant 6 : i32
    %91 = arith.index_cast %c6_i32 : i32 to index
    %c0_24 = arith.constant 0 : index
    %c0_25 = arith.constant 0 : index
    %92 = vector.load %arg2[%91, %c0_24, %c0_25] : memref<8x8x128xbf16, #tpu.memory_space<vmem>>, vector<1x8x128xbf16>
    %93 = vector.shape_cast %92 : vector<1x8x128xbf16> to vector<8x128xbf16>
    %94 = arith.extf %93 : vector<8x128xbf16> to vector<8x128xf32>
    %95 = arith.truncf %90 : vector<8x128xf32> to vector<8x128xbf16>
    %cst_26 = arith.constant dense<0.000000e+00> : vector<8x128xf32>
    %96 = tpu.matmul %95, %4, %cst_26 {dimension_numbers = #tpu.dot_dimension_numbers<[1], [0], [0], [1], [0, 0, 1, 1], [], []>} : vector<8x128xbf16>, vector<128x128xbf16>, vector<8x128xf32> -> vector<8x128xf32>
    %97 = arith.addf %94, %96 : vector<8x128xf32>
    %98 = math.tanh %97 : vector<8x128xf32>
    %99 = arith.addi %0, %c6_i32 : i32
    %100 = vector.broadcast %99 : i32 to vector<8x1xi32>
    %101 = arith.cmpi slt, %100, %5 : vector<8x1xi32>
    %102 = vector.shape_cast %101 : vector<8x1xi1> to vector<8x1xi1>
    %103 = vector.broadcast %102 : vector<8x1xi1> to vector<8x128xi1>
    %104 = arith.select %103, %98, %90 : vector<8x128xi1>, vector<8x128xf32>
    %c7_i32 = arith.constant 7 : i32
    %105 = arith.index_cast %c7_i32 : i32 to index
    %c0_27 = arith.constant 0 : index
    %c0_28 = arith.constant 0 : index
    %106 = vector.load %arg2[%105, %c0_27, %c0_28] : memref<8x8x128xbf16, #tpu.memory_space<vmem>>, vector<1x8x128xbf16>
    %107 = vector.shape_cast %106 : vector<1x8x128xbf16> to vector<8x128xbf16>
    %108 = arith.extf %107 : vector<8x128xbf16> to vector<8x128xf32>
    %109 = arith.truncf %104 : vector<8x128xf32> to vector<8x128xbf16>
    %cst_29 = arith.constant dense<0.000000e+00> : vector<8x128xf32>
    %110 = tpu.matmul %109, %4, %cst_29 {dimension_numbers = #tpu.dot_dimension_numbers<[1], [0], [0], [1], [0, 0, 1, 1], [], []>} : vector<8x128xbf16>, vector<128x128xbf16>, vector<8x128xf32> -> vector<8x128xf32>
    %111 = arith.addf %108, %110 : vector<8x128xf32>
    %112 = math.tanh %111 : vector<8x128xf32>
    %113 = arith.addi %0, %c7_i32 : i32
    %114 = vector.broadcast %113 : i32 to vector<8x1xi32>
    %115 = arith.cmpi slt, %114, %5 : vector<8x1xi32>
    %116 = vector.shape_cast %115 : vector<8x1xi1> to vector<8x1xi1>
    %117 = vector.broadcast %116 : vector<8x1xi1> to vector<8x128xi1>
    %118 = arith.select %117, %112, %104 : vector<8x128xi1>, vector<8x128xf32>
    %c8_i32_30 = arith.constant 8 : i32
    %c0_31 = arith.constant 0 : index
    %c0_32 = arith.constant 0 : index
    %119 = vector.load %arg8[%c0_31, %c0_32] : memref<8x128xf32, #tpu.memory_space<vmem>>, vector<8x128xf32>
    tpu.vector_store %arg8[%c0_31, %c0_32], %118 {strides = array<i32>} : memref<8x128xf32, #tpu.memory_space<vmem>>, vector<8x128xf32>,
    %c0_i32_33 = arith.constant 0 : i32
    %120 = arith.cmpi eq, %arg1, %c0_i32_33 : i32
    %121 = arith.extui %120 : i1 to i32
    %c0_i32_34 = arith.constant 0 : i32
    %122 = arith.cmpi ne, %121, %c0_i32_34 : i32
    scf.if %122 {
      %123 = arith.truncf %118 : vector<8x128xf32> to vector<8x128xbf16>
      %c0_35 = arith.constant 0 : index
      %c0_36 = arith.constant 0 : index
      %124 = vector.load %arg5[%c0_35, %c0_36] : memref<128x128xbf16, #tpu.memory_space<vmem>>, vector<128x128xbf16>
      %cst_37 = arith.constant dense<0.000000e+00> : vector<8x128xf32>
      %125 = tpu.matmul %123, %124, %cst_37 {dimension_numbers = #tpu.dot_dimension_numbers<[1], [0], [0], [1], [0, 0, 1, 1], [], []>} : vector<8x128xbf16>, vector<128x128xbf16>, vector<8x128xf32> -> vector<8x128xf32>
      %c0_38 = arith.constant 0 : index
      %c0_39 = arith.constant 0 : index
      %126 = vector.load %arg6[%c0_38, %c0_39] : memref<1x128xf32, #tpu.memory_space<vmem>>, vector<1x128xf32>
      %127 = vector.broadcast %126 : vector<1x128xf32> to vector<8x128xf32>
      %128 = arith.addf %125, %127 : vector<8x128xf32>
      %c0_40 = arith.constant 0 : index
      %c0_41 = arith.constant 0 : index
      %129 = vector.load %arg7[%c0_40, %c0_41] : memref<8x128xf32, #tpu.memory_space<vmem>>, vector<8x128xf32>
      tpu.vector_store %arg7[%c0_40, %c0_41], %128 {strides = array<i32>} : memref<8x128xf32, #tpu.memory_space<vmem>>, vector<8x128xf32>,
    } else {
    }
    return
  }
  func.func @transform_0(%arg0: i32, %arg1: i32) -> (i32, i32, i32) {
    %c0_i32 = arith.constant 0 : i32
    %c0_i32_0 = arith.constant 0 : i32
    return %arg1, %arg0, %c0_i32 : i32, i32, i32
  }
  func.func @transform_1(%arg0: i32, %arg1: i32) -> (i32, i32) {
    %c0_i32 = arith.constant 0 : i32
    %c0_i32_0 = arith.constant 0 : i32
    return %arg0, %c0_i32 : i32, i32
  }
  func.func @transform_2(%arg0: i32, %arg1: i32) -> (i32, i32) {
    %c0_i32 = arith.constant 0 : i32
    %c0_i32_0 = arith.constant 0 : i32
    %c0_i32_1 = arith.constant 0 : i32
    return %c0_i32, %c0_i32_0 : i32, i32
  }
  func.func @transform_3(%arg0: i32, %arg1: i32) -> (i32, i32) {
    %c0_i32 = arith.constant 0 : i32
    %c0_i32_0 = arith.constant 0 : i32
    %c0_i32_1 = arith.constant 0 : i32
    return %c0_i32, %c0_i32_0 : i32, i32
  }
  func.func @transform_4(%arg0: i32, %arg1: i32) -> (i32, i32) {
    %c0_i32 = arith.constant 0 : i32
    %c0_i32_0 = arith.constant 0 : i32
    %c0_i32_1 = arith.constant 0 : i32
    return %c0_i32, %c0_i32_0 : i32, i32
  }
  func.func @transform_5(%arg0: i32, %arg1: i32) -> (i32, i32) {
    %c0_i32 = arith.constant 0 : i32
    %c0_i32_0 = arith.constant 0 : i32
    return %arg0, %c0_i32 : i32, i32
  }
}

</mosaic_0001>

<llo_original>
// kernel: review_classifier_rnn.1
$region0: #{review_classifier_rnn.1}
  #allocation0 [shape = 'u32[]', space=smem, size = 0x4, offset = 0x4, fixed_abs, tag = 'smem constant byte address 0x4 - core index']
  #allocation1 [shape = 'u32[144,128]{1,0:T(1,128)}', space=vmem, size = 0x12000, scoped, tag = 'internal scratch']
  #allocation2 [shape = 'f32[8,128]{1,0:T(8,128)}', space=vmem, size = 0x1000, scoped, tag = 'scratch operand']
  %s0 = inlined_call_operand.vmem [shape: bf16[8,8,128], index: 0, kind: input, shape index: {}]
  %s1 = inlined_call_operand.vmem [shape: s32[8,1], index: 1, kind: input, shape index: {}]
  %s2 = inlined_call_operand.vmem [shape: bf16[128,128], index: 2, kind: input, shape index: {}]
  %s3 = inlined_call_operand.vmem [shape: bf16[128,128], index: 3, kind: input, shape index: {}]
  %s4 = inlined_call_operand.vmem [shape: f32[1,128], index: 4, kind: input, shape index: {}]
  %s5 = inlined_call_operand.vmem [shape: f32[8,128], index: 5, kind: output, shape index: {}]
  %s6 = sld [smem:[#allocation0]]
  $region38: #{review_classifier_rnn.1} parent=0
    _
  %s8 = ssub.s32 1, %s6
  %s9 = scalar_select 0, %s8, %s6
  // Predicated region
  $region2: #{review_classifier_rnn.1} parent=0 // pred_check
    _
  $region3: #{review_classifier_rnn.1} parent=0 // pred_check_branch
    %11 = sbr.rel (0) target = $region5
  $region4: #{review_classifier_rnn.1} parent=0 // pred_region
    _
  $region5: #{review_classifier_rnn.1} parent=0 // pred_fallthru
    _
  // Predicated region
  $region6: #{review_classifier_rnn.1} parent=0 // pred_check
    _
  $region7: #{review_classifier_rnn.1} parent=0 // pred_check_branch
    %13 = sbr.rel (0) target = $region9
  $region8: #{review_classifier_rnn.1} parent=0 // pred_region
    _
  $region9: #{review_classifier_rnn.1} parent=0 // pred_fallthru
    _
  // Predicated region
  $region10: #{review_classifier_rnn.1} parent=0 // pred_check
    _
  $region11: #{review_classifier_rnn.1} parent=0 // pred_check_branch
    %15 = sbr.rel (0) target = $region13
  $region12: #{review_classifier_rnn.1} parent=0 // pred_region
    _
  $region13: #{review_classifier_rnn.1} parent=0 // pred_fallthru
    _
  // Predicated region
  $region14: #{review_classifier_rnn.1} parent=0 // pred_check
    _
  $region15: #{review_classifier_rnn.1} parent=0 // pred_check_branch
    %17 = sbr.rel (0) target = $region17
  $region16: #{review_classifier_rnn.1} parent=0 // pred_region
    _
  $region17: #{review_classifier_rnn.1} parent=0 // pred_fallthru
    _
  // Predicated region
  $region18: #{review_classifier_rnn.1} parent=0 // pred_check
    _
  $region19: #{review_classifier_rnn.1} parent=0 // pred_check_branch
    %19 = sbr.rel (0) target = $region21
  $region20: #{review_classifier_rnn.1} parent=0 // pred_region
    _
  $region21: #{review_classifier_rnn.1} parent=0 // pred_fallthru
    _
  %s21 = smul.u32 0, 8
  %p22 = scmp.eq.s32.totalorder 0, 0
  // Predicated region
  $region22: #{review_classifier_rnn.1} parent=0 // pred_check
    %p23 = pneg %p22
  $region23: #{review_classifier_rnn.1} parent=0 // pred_check_branch
    %25 = sbr.rel (%p23) target = $region25
  $region24: #{review_classifier_rnn.1} parent=0 // pred_region
    %26 = vst [vmem:[#allocation2] sm:$0xff] 0.0
  $region25: #{review_classifier_rnn.1} parent=0 // pred_fallthru
    _
  %v27 = vld [vmem:[%s2] sm:$0xf]
  %v28 = vld [vmem:[%s2 + $0x4] sm:$0xf]
  %v29 = vld [vmem:[%s2 + $0x8] sm:$0xf]
  %v30 = vld [vmem:[%s2 + $0xc] sm:$0xf]
  %v31 = vld [vmem:[%s2 + $0x10] sm:$0xf]
  %v32 = vld [vmem:[%s2 + $0x14] sm:$0xf]
  %v33 = vld [vmem:[%s2 + $0x18] sm:$0xf]
  %v34 = vld [vmem:[%s2 + $0x1c] sm:$0xf]
  %v35 = vld [vmem:[%s2 + $0x20] sm:$0xf]
  %v36 = vld [vmem:[%s2 + $0x24] sm:$0xf]
  %v37 = vld [vmem:[%s2 + $0x28] sm:$0xf]
  %v38 = vld [vmem:[%s2 + $0x2c] sm:$0xf]
  %v39 = vld [vmem:[%s2 + $0x30] sm:$0xf]
  %v40 = vld [vmem:[%s2 + $0x34] sm:$0xf]
  %v41 = vld [vmem:[%s2 + $0x38] sm:$0xf]
  %v42 = vld [vmem:[%s2 + $0x3c] sm:$0xf]
  %v43 = vld [vmem:[%s1] sm:$0xff]
  %v44 = vld [vmem:[#allocation2] sm:$0xff]
  %v45 = vld [vmem:[%s0] sm:$0xf]
  %v46 = vunpack.c.l.bf16 %v45
  %v47 = vpack.c.bf16 %v44, %v44
  %v64 = vunpack.c.l.b16 %v27
  %v65 = vunpack.c.l.b16 %v28
  %v66 = vunpack.c.l.b16 %v29
  %v67 = vunpack.c.l.b16 %v30
  %v68 = vunpack.c.l.b16 %v31
  %v69 = vunpack.c.l.b16 %v32
  %v70 = vunpack.c.l.b16 %v33
  %v71 = vunpack.c.l.b16 %v34
  %v72 = vunpack.c.l.b16 %v35
  %v73 = vunpack.c.l.b16 %v36
  %v74 = vunpack.c.l.b16 %v37
  %v75 = vunpack.c.l.b16 %v38
  %v76 = vunpack.c.l.b16 %v39
  %v77 = vunpack.c.l.b16 %v40
  %v78 = vunpack.c.l.b16 %v41
  %v79 = vunpack.c.l.b16 %v42
  %v80 = vpack.c.b16 %v65, %v64
  %v81 = vpack.c.b16 %v67, %v66
  %v82 = vpack.c.b16 %v69, %v68
  %v83 = vpack.c.b16 %v71, %v70
  %v84 = vpack.c.b16 %v73, %v72
  %v85 = vpack.c.b16 %v75, %v74
  %v86 = vpack.c.b16 %v77, %v76
  %v87 = vpack.c.b16 %v79, %v78
  %96 = vmatprep.subr.bf16.mxu0 0
  %97 = vmatpush1.bf16.msra.mxu0 %v80
  %98 = vmatprep.subr.bf16.mxu0 0
  %99 = vmatpush1.bf16.msra.mxu0 %v81
  %100 = vmatprep.subr.bf16.mxu0 0
  %101 = vmatpush1.bf16.msra.mxu0 %v82
  %102 = vmatprep.subr.bf16.mxu0 0
  %103 = vmatpush1.bf16.msra.mxu0 %v83
  %104 = vmatprep.subr.bf16.mxu0 0
  %105 = vmatpush1.bf16.msra.mxu0 %v84
  %106 = vmatprep.subr.bf16.mxu0 0
  %107 = vmatpush1.bf16.msra.mxu0 %v85
  %108 = vmatprep.subr.bf16.mxu0 0
  %109 = vmatpush1.bf16.msra.mxu0 %v86
  %110 = vmatprep.subr.bf16.mxu0 0
  %111 = vmatpush1.bf16.msra.mxu0 %v87
  %112 = vmatprep.subr.bf16.mxu0 0
  %113 = vmatpush1.bf16.msra.mxu0 0
  %114 = vmatprep.subr.bf16.mxu0 0
  %115 = vmatpush1.bf16.msra.mxu0 0
  %116 = vmatprep.subr.bf16.mxu0 0
  %117 = vmatpush1.bf16.msra.mxu0 0
  %118 = vmatprep.subr.bf16.mxu0 0
  %119 = vmatpush1.bf16.msra.mxu0 0
  %120 = vmatprep.subr.bf16.mxu0 0
  %121 = vmatpush1.bf16.msra.mxu0 0
  %122 = vmatprep.subr.bf16.mxu0 0
  %123 = vmatpush1.bf16.msra.mxu0 0
  %124 = vmatprep.subr.bf16.mxu0 0
  %125 = vmatpush1.bf16.msra.mxu0 0
  %126 = vmatprep.subr.bf16.mxu0 0
  %127 = vmatpush1.bf16.msra.mxu0 0
  %128 = vmatprep.mubr.bf16.mxu0 0
  %129 = vmatmul.mubr.bf16.gmra.mrb[0].mxu0 %v47
  %v130 = vpop.f32.mrb[0].mxu0
  %v131 = vadd.f32 0.0, %v130
  %v132 = vpop.f32.mrb[0].mxu0
  %v133 = vpop.f32.mrb[0].mxu0
  %v134 = vpop.f32.mrb[0].mxu0
  %135 = vdwg.mxu0
  %v136 = vadd.f32 %v46, %v131
  %v137 = vtanh.pop %v136
  %v138 = vstv %s21
  %vm139 = vcmp.lt.s32.totalorder %v138, %v43
  %v140 = vsel %vm139, 1, 0
  %141 = vset.pattern.permute.xlu0 0
  %142 = vperm.xlu0 %141, %v140
  %v143 = vpop.permute.xlu0 %142
  %vm144 = vcmp.eq.s32.totalorder %v143, 1
  %v145 = vsel %vm144, %v137, %v44
  %s146 = scalar_lea.vmem %s0, 4
  %v147 = vld [vmem:[%s146] sm:$0xf]
  %v148 = vunpack.c.l.bf16 %v147
  %v149 = vpack.c.bf16 %v145, %v145
  %150 = vmatprep.subr.bf16.mxu0 0
  %151 = vmatpush1.bf16.msra.mxu0 %v80
  %152 = vmatprep.subr.bf16.mxu0 0
  %153 = vmatpush1.bf16.msra.mxu0 %v81
  %154 = vmatprep.subr.bf16.mxu0 0
  %155 = vmatpush1.bf16.msra.mxu0 %v82
  %156 = vmatprep.subr.bf16.mxu0 0
  %157 = vmatpush1.bf16.msra.mxu0 %v83
  %158 = vmatprep.subr.bf16.mxu0 0
  %159 = vmatpush1.bf16.msra.mxu0 %v84
  %160 = vmatprep.subr.bf16.mxu0 0
  %161 = vmatpush1.bf16.msra.mxu0 %v85
  %162 = vmatprep.subr.bf16.mxu0 0
  %163 = vmatpush1.bf16.msra.mxu0 %v86
  %164 = vmatprep.subr.bf16.mxu0 0
  %165 = vmatpush1.bf16.msra.mxu0 %v87
  %166 = vmatprep.subr.bf16.mxu0 0
  %167 = vmatpush1.bf16.msra.mxu0 0
  %168 = vmatprep.subr.bf16.mxu0 0
  %169 = vmatpush1.bf16.msra.mxu0 0
  %170 = vmatprep.subr.bf16.mxu0 0
  %171 = vmatpush1.bf16.msra.mxu0 0
  %172 = vmatprep.subr.bf16.mxu0 0
  %173 = vmatpush1.bf16.msra.mxu0 0
  %174 = vmatprep.subr.bf16.mxu0 0
  %175 = vmatpush1.bf16.msra.mxu0 0
  %176 = vmatprep.subr.bf16.mxu0 0
  %177 = vmatpush1.bf16.msra.mxu0 0
  %178 = vmatprep.subr.bf16.mxu0 0
  %179 = vmatpush1.bf16.msra.mxu0 0
  %180 = vmatprep.subr.bf16.mxu0 0
  %181 = vmatpush1.bf16.msra.mxu0 0
  %182 = vmatprep.mubr.bf16.mxu0 0
  %183 = vmatmul.mubr.bf16.gmra.mrb[0].mxu0 %v149
  %v184 = vpop.f32.mrb[0].mxu0
  %v185 = vadd.f32 0.0, %v184
  %v186 = vpop.f32.mrb[0].mxu0
  %v187 = vpop.f32.mrb[0].mxu0
  %v188 = vpop.f32.mrb[0].mxu0
  %189 = vdwg.mxu0
  %v190 = vadd.f32 %v148, %v185
  %v191 = vtanh.pop %v190
  %s192 = sadd.s32 %s21, 1
  %v193 = vstv %s192
  %vm194 = vcmp.lt.s32.totalorder %v193, %v43
  %v195 = vsel %vm194, 1, 0
  %196 = vset.pattern.permute.xlu0 0
  %197 = vperm.xlu0 %196, %v195
  %v198 = vpop.permute.xlu0 %197
  %vm199 = vcmp.eq.s32.totalorder %v198, 1
  %v200 = vsel %vm199, %v191, %v145
  %s201 = scalar_lea.vmem %s0, 8
  %v202 = vld [vmem:[%s201] sm:$0xf]
  %v203 = vunpack.c.l.bf16 %v202
  %v204 = vpack.c.bf16 %v200, %v200
  %205 = vmatprep.subr.bf16.mxu0 0
  %206 = vmatpush1.bf16.msra.mxu0 %v80
  %207 = vmatprep.subr.bf16.mxu0 0
  %208 = vmatpush1.bf16.msra.mxu0 %v81
  %209 = vmatprep.subr.bf16.mxu0 0
  %210 = vmatpush1.bf16.msra.mxu0 %v82
  %211 = vmatprep.subr.bf16.mxu0 0
  %212 = vmatpush1.bf16.msra.mxu0 %v83
  %213 = vmatprep.subr.bf16.mxu0 0
  %214 = vmatpush1.bf16.msra.mxu0 %v84
  %215 = vmatprep.subr.bf16.mxu0 0
  %216 = vmatpush1.bf16.msra.mxu0 %v85
  %217 = vmatprep.subr.bf16.mxu0 0
  %218 = vmatpush1.bf16.msra.mxu0 %v86
  %219 = vmatprep.subr.bf16.mxu0 0
  %220 = vmatpush1.bf16.msra.mxu0 %v87
  %221 = vmatprep.subr.bf16.mxu0 0
  %222 = vmatpush1.bf16.msra.mxu0 0
  %223 = vmatprep.subr.bf16.mxu0 0
  %224 = vmatpush1.bf16.msra.mxu0 0
  %225 = vmatprep.subr.bf16.mxu0 0
  %226 = vmatpush1.bf16.msra.mxu0 0
  %227 = vmatprep.subr.bf16.mxu0 0
  %228 = vmatpush1.bf16.msra.mxu0 0
  %229 = vmatprep.subr.bf16.mxu0 0
  %230 = vmatpush1.bf16.msra.mxu0 0
  %231 = vmatprep.subr.bf16.mxu0 0
  %232 = vmatpush1.bf16.msra.mxu0 0
  %233 = vmatprep.subr.bf16.mxu0 0
  %234 = vmatpush1.bf16.msra.mxu0 0
  %235 = vmatprep.subr.bf16.mxu0 0
  %236 = vmatpush1.bf16.msra.mxu0 0
  %237 = vmatprep.mubr.bf16.mxu0 0
  %238 = vmatmul.mubr.bf16.gmra.mrb[0].mxu0 %v204
  %v239 = vpop.f32.mrb[0].mxu0
  %v240 = vadd.f32 0.0, %v239
  %v241 = vpop.f32.mrb[0].mxu0
  %v242 = vpop.f32.mrb[0].mxu0
  %v243 = vpop.f32.mrb[0].mxu0
  %244 = vdwg.mxu0
  %v245 = vadd.f32 %v203, %v240
  %v246 = vtanh.pop %v245
  %s247 = sadd.s32 %s21, 2
  %v248 = vstv %s247
  %vm249 = vcmp.lt.s32.totalorder %v248, %v43
  %v250 = vsel %vm249, 1, 0
  %251 = vset.pattern.permute.xlu0 0
  %252 = vperm.xlu0 %251, %v250
  %v253 = vpop.permute.xlu0 %252
  %vm254 = vcmp.eq.s32.totalorder %v253, 1
  %v255 = vsel %vm254, %v246, %v200
  %s256 = scalar_lea.vmem %s0, 12
  %v257 = vld [vmem:[%s256] sm:$0xf]
  %v258 = vunpack.c.l.bf16 %v257
  %v259 = vpack.c.bf16 %v255, %v255
  %260 = vmatprep.subr.bf16.mxu0 0
  %261 = vmatpush1.bf16.msra.mxu0 %v80
  %262 = vmatprep.subr.bf16.mxu0 0
  %263 = vmatpush1.bf16.msra.mxu0 %v81
  %264 = vmatprep.subr.bf16.mxu0 0
  %265 = vmatpush1.bf16.msra.mxu0 %v82
  %266 = vmatprep.subr.bf16.mxu0 0
  %267 = vmatpush1.bf16.msra.mxu0 %v83
  %268 = vmatprep.subr.bf16.mxu0 0
  %269 = vmatpush1.bf16.msra.mxu0 %v84
  %270 = vmatprep.subr.bf16.mxu0 0
  %271 = vmatpush1.bf16.msra.mxu0 %v85
  %272 = vmatprep.subr.bf16.mxu0 0
  %273 = vmatpush1.bf16.msra.mxu0 %v86
  %274 = vmatprep.subr.bf16.mxu0 0
  %275 = vmatpush1.bf16.msra.mxu0 %v87
  %276 = vmatprep.subr.bf16.mxu0 0
  %277 = vmatpush1.bf16.msra.mxu0 0
  %278 = vmatprep.subr.bf16.mxu0 0
  %279 = vmatpush1.bf16.msra.mxu0 0
  %280 = vmatprep.subr.bf16.mxu0 0
  %281 = vmatpush1.bf16.msra.mxu0 0
  %282 = vmatprep.subr.bf16.mxu0 0
  %283 = vmatpush1.bf16.msra.mxu0 0
  %284 = vmatprep.subr.bf16.mxu0 0
  %285 = vmatpush1.bf16.msra.mxu0 0
  %286 = vmatprep.subr.bf16.mxu0 0
  %287 = vmatpush1.bf16.msra.mxu0 0
  %288 = vmatprep.subr.bf16.mxu0 0
  %289 = vmatpush1.bf16.msra.mxu0 0
  %290 = vmatprep.subr.bf16.mxu0 0
  %291 = vmatpush1.bf16.msra.mxu0 0
  %292 = vmatprep.mubr.bf16.mxu0 0
  %293 = vmatmul.mubr.bf16.gmra.mrb[0].mxu0 %v259
  %v294 = vpop.f32.mrb[0].mxu0
  %v295 = vadd.f32 0.0, %v294
  %v296 = vpop.f32.mrb[0].mxu0
  %v297 = vpop.f32.mrb[0].mxu0
  %v298 = vpop.f32.mrb[0].mxu0
  %299 = vdwg.mxu0
  %v300 = vadd.f32 %v258, %v295
  %v301 = vtanh.pop %v300
  %s302 = sadd.s32 %s21, 3
  %v303 = vstv %s302
  %vm304 = vcmp.lt.s32.totalorder %v303, %v43
  %v305 = vsel %vm304, 1, 0
  %306 = vset.pattern.permute.xlu0 0
  %307 = vperm.xlu0 %306, %v305
  %v308 = vpop.permute.xlu0 %307
  %vm309 = vcmp.eq.s32.totalorder %v308, 1
  %v310 = vsel %vm309, %v301, %v255
  %s311 = scalar_lea.vmem %s0, 16
  %v312 = vld [vmem:[%s311] sm:$0xf]
  %v313 = vunpack.c.l.bf16 %v312
  %v314 = vpack.c.bf16 %v310, %v310
  %315 = vmatprep.subr.bf16.mxu0 0
  %316 = vmatpush1.bf16.msra.mxu0 %v80
  %317 = vmatprep.subr.bf16.mxu0 0
  %318 = vmatpush1.bf16.msra.mxu0 %v81
  %319 = vmatprep.subr.bf16.mxu0 0
  %320 = vmatpush1.bf16.msra.mxu0 %v82
  %321 = vmatprep.subr.bf16.mxu0 0
  %322 = vmatpush1.bf16.msra.mxu0 %v83
  %323 = vmatprep.subr.bf16.mxu0 0
  %324 = vmatpush1.bf16.msra.mxu0 %v84
  %325 = vmatprep.subr.bf16.mxu0 0
  %326 = vmatpush1.bf16.msra.mxu0 %v85
  %327 = vmatprep.subr.bf16.mxu0 0
  %328 = vmatpush1.bf16.msra.mxu0 %v86
  %329 = vmatprep.subr.bf16.mxu0 0
  %330 = vmatpush1.bf16.msra.mxu0 %v87
  %331 = vmatprep.subr.bf16.mxu0 0
  %332 = vmatpush1.bf16.msra.mxu0 0
  %333 = vmatprep.subr.bf16.mxu0 0
  %334 = vmatpush1.bf16.msra.mxu0 0
  %335 = vmatprep.subr.bf16.mxu0 0
  %336 = vmatpush1.bf16.msra.mxu0 0
  %337 = vmatprep.subr.bf16.mxu0 0
  %338 = vmatpush1.bf16.msra.mxu0 0
  %339 = vmatprep.subr.bf16.mxu0 0
  %340 = vmatpush1.bf16.msra.mxu0 0
  %341 = vmatprep.subr.bf16.mxu0 0
  %342 = vmatpush1.bf16.msra.mxu0 0
  %343 = vmatprep.subr.bf16.mxu0 0
  %344 = vmatpush1.bf16.msra.mxu0 0
  %345 = vmatprep.subr.bf16.mxu0 0
  %346 = vmatpush1.bf16.msra.mxu0 0
  %347 = vmatprep.mubr.bf16.mxu0 0
  %348 = vmatmul.mubr.bf16.gmra.mrb[0].mxu0 %v314
  %v349 = vpop.f32.mrb[0].mxu0
  %v350 = vadd.f32 0.0, %v349
  %v351 = vpop.f32.mrb[0].mxu0
  %v352 = vpop.f32.mrb[0].mxu0
  %v353 = vpop.f32.mrb[0].mxu0
  %354 = vdwg.mxu0
  %v355 = vadd.f32 %v313, %v350
  %v356 = vtanh.pop %v355
  %s357 = sadd.s32 %s21, 4
  %v358 = vstv %s357
  %vm359 = vcmp.lt.s32.totalorder %v358, %v43
  %v360 = vsel %vm359, 1, 0
  %361 = vset.pattern.permute.xlu0 0
  %362 = vperm.xlu0 %361, %v360
  %v363 = vpop.permute.xlu0 %362
  %vm364 = vcmp.eq.s32.totalorder %v363, 1
  %v365 = vsel %vm364, %v356, %v310
  %s366 = scalar_lea.vmem %s0, 20
  %v367 = vld [vmem:[%s366] sm:$0xf]
  %v368 = vunpack.c.l.bf16 %v367
  %v369 = vpack.c.bf16 %v365, %v365
  %370 = vmatprep.subr.bf16.mxu0 0
  %371 = vmatpush1.bf16.msra.mxu0 %v80
  %372 = vmatprep.subr.bf16.mxu0 0
  %373 = vmatpush1.bf16.msra.mxu0 %v81
  %374 = vmatprep.subr.bf16.mxu0 0
  %375 = vmatpush1.bf16.msra.mxu0 %v82
  %376 = vmatprep.subr.bf16.mxu0 0
  %377 = vmatpush1.bf16.msra.mxu0 %v83
  %378 = vmatprep.subr.bf16.mxu0 0
  %379 = vmatpush1.bf16.msra.mxu0 %v84
  %380 = vmatprep.subr.bf16.mxu0 0
  %381 = vmatpush1.bf16.msra.mxu0 %v85
  %382 = vmatprep.subr.bf16.mxu0 0
  %383 = vmatpush1.bf16.msra.mxu0 %v86
  %384 = vmatprep.subr.bf16.mxu0 0
  %385 = vmatpush1.bf16.msra.mxu0 %v87
  %386 = vmatprep.subr.bf16.mxu0 0
  %387 = vmatpush1.bf16.msra.mxu0 0
  %388 = vmatprep.subr.bf16.mxu0 0
  %389 = vmatpush1.bf16.msra.mxu0 0
  %390 = vmatprep.subr.bf16.mxu0 0
  %391 = vmatpush1.bf16.msra.mxu0 0
  %392 = vmatprep.subr.bf16.mxu0 0
  %393 = vmatpush1.bf16.msra.mxu0 0
  %394 = vmatprep.subr.bf16.mxu0 0
  %395 = vmatpush1.bf16.msra.mxu0 0
  %396 = vmatprep.subr.bf16.mxu0 0
  %397 = vmatpush1.bf16.msra.mxu0 0
  %398 = vmatprep.subr.bf16.mxu0 0
  %399 = vmatpush1.bf16.msra.mxu0 0
  %400 = vmatprep.subr.bf16.mxu0 0
  %401 = vmatpush1.bf16.msra.mxu0 0
  %402 = vmatprep.mubr.bf16.mxu0 0
  %403 = vmatmul.mubr.bf16.gmra.mrb[0].mxu0 %v369
  %v404 = vpop.f32.mrb[0].mxu0
  %v405 = vadd.f32 0.0, %v404
  %v406 = vpop.f32.mrb[0].mxu0
  %v407 = vpop.f32.mrb[0].mxu0
  %v408 = vpop.f32.mrb[0].mxu0
  %409 = vdwg.mxu0
  %v410 = vadd.f32 %v368, %v405
  %v411 = vtanh.pop %v410
  %s412 = sadd.s32 %s21, 5
  %v413 = vstv %s412
  %vm414 = vcmp.lt.s32.totalorder %v413, %v43
  %v415 = vsel %vm414, 1, 0
  %416 = vset.pattern.permute.xlu0 0
  %417 = vperm.xlu0 %416, %v415
  %v418 = vpop.permute.xlu0 %417
  %vm419 = vcmp.eq.s32.totalorder %v418, 1
  %v420 = vsel %vm419, %v411, %v365
  %s421 = scalar_lea.vmem %s0, 24
  %v422 = vld [vmem:[%s421] sm:$0xf]
  %v423 = vunpack.c.l.bf16 %v422
  %v424 = vpack.c.bf16 %v420, %v420
  %425 = vmatprep.subr.bf16.mxu0 0
  %426 = vmatpush1.bf16.msra.mxu0 %v80
  %427 = vmatprep.subr.bf16.mxu0 0
  %428 = vmatpush1.bf16.msra.mxu0 %v81
  %429 = vmatprep.subr.bf16.mxu0 0
  %430 = vmatpush1.bf16.msra.mxu0 %v82
  %431 = vmatprep.subr.bf16.mxu0 0
  %432 = vmatpush1.bf16.msra.mxu0 %v83
  %433 = vmatprep.subr.bf16.mxu0 0
  %434 = vmatpush1.bf16.msra.mxu0 %v84
  %435 = vmatprep.subr.bf16.mxu0 0
  %436 = vmatpush1.bf16.msra.mxu0 %v85
  %437 = vmatprep.subr.bf16.mxu0 0
  %438 = vmatpush1.bf16.msra.mxu0 %v86
  %439 = vmatprep.subr.bf16.mxu0 0
  %440 = vmatpush1.bf16.msra.mxu0 %v87
  %441 = vmatprep.subr.bf16.mxu0 0
  %442 = vmatpush1.bf16.msra.mxu0 0
  %443 = vmatprep.subr.bf16.mxu0 0
  %444 = vmatpush1.bf16.msra.mxu0 0
  %445 = vmatprep.subr.bf16.mxu0 0
  %446 = vmatpush1.bf16.msra.mxu0 0
  %447 = vmatprep.subr.bf16.mxu0 0
  %448 = vmatpush1.bf16.msra.mxu0 0
  %449 = vmatprep.subr.bf16.mxu0 0
  %450 = vmatpush1.bf16.msra.mxu0 0
  %451 = vmatprep.subr.bf16.mxu0 0
  %452 = vmatpush1.bf16.msra.mxu0 0
  %453 = vmatprep.subr.bf16.mxu0 0
  %454 = vmatpush1.bf16.msra.mxu0 0
  %455 = vmatprep.subr.bf16.mxu0 0
  %456 = vmatpush1.bf16.msra.mxu0 0
  %457 = vmatprep.mubr.bf16.mxu0 0
  %458 = vmatmul.mubr.bf16.gmra.mrb[0].mxu0 %v424
  %v459 = vpop.f32.mrb[0].mxu0
  %v460 = vadd.f32 0.0, %v459
  %v461 = vpop.f32.mrb[0].mxu0
  %v462 = vpop.f32.mrb[0].mxu0
  %v463 = vpop.f32.mrb[0].mxu0
  %464 = vdwg.mxu0
  %v465 = vadd.f32 %v423, %v460
  %v466 = vtanh.pop %v465
  %s467 = sadd.s32 %s21, 6
  %v468 = vstv %s467
  %vm469 = vcmp.lt.s32.totalorder %v468, %v43
  %v470 = vsel %vm469, 1, 0
  %471 = vset.pattern.permute.xlu0 0
  %472 = vperm.xlu0 %471, %v470
  %v473 = vpop.permute.xlu0 %472
  %vm474 = vcmp.eq.s32.totalorder %v473, 1
  %v475 = vsel %vm474, %v466, %v420
  %s476 = scalar_lea.vmem %s0, 28
  %v477 = vld [vmem:[%s476] sm:$0xf]
  %v478 = vunpack.c.l.bf16 %v477
  %v479 = vpack.c.bf16 %v475, %v475
  %480 = vmatprep.subr.bf16.mxu0 0
  %481 = vmatpush1.bf16.msra.mxu0 %v80
  %482 = vmatprep.subr.bf16.mxu0 0
  %483 = vmatpush1.bf16.msra.mxu0 %v81
  %484 = vmatprep.subr.bf16.mxu0 0
  %485 = vmatpush1.bf16.msra.mxu0 %v82
  %486 = vmatprep.subr.bf16.mxu0 0
  %487 = vmatpush1.bf16.msra.mxu0 %v83
  %488 = vmatprep.subr.bf16.mxu0 0
  %489 = vmatpush1.bf16.msra.mxu0 %v84
  %490 = vmatprep.subr.bf16.mxu0 0
  %491 = vmatpush1.bf16.msra.mxu0 %v85
  %492 = vmatprep.subr.bf16.mxu0 0
  %493 = vmatpush1.bf16.msra.mxu0 %v86
  %494 = vmatprep.subr.bf16.mxu0 0
  %495 = vmatpush1.bf16.msra.mxu0 %v87
  %496 = vmatprep.subr.bf16.mxu0 0
  %497 = vmatpush1.bf16.msra.mxu0 0
  %498 = vmatprep.subr.bf16.mxu0 0
  %499 = vmatpush1.bf16.msra.mxu0 0
  %500 = vmatprep.subr.bf16.mxu0 0
  %501 = vmatpush1.bf16.msra.mxu0 0
  %502 = vmatprep.subr.bf16.mxu0 0
  %503 = vmatpush1.bf16.msra.mxu0 0
  %504 = vmatprep.subr.bf16.mxu0 0
  %505 = vmatpush1.bf16.msra.mxu0 0
  %506 = vmatprep.subr.bf16.mxu0 0
  %507 = vmatpush1.bf16.msra.mxu0 0
  %508 = vmatprep.subr.bf16.mxu0 0
  %509 = vmatpush1.bf16.msra.mxu0 0
  %510 = vmatprep.subr.bf16.mxu0 0
  %511 = vmatpush1.bf16.msra.mxu0 0
  %512 = vmatprep.mubr.bf16.mxu0 0
  %513 = vmatmul.mubr.bf16.gmra.mrb[0].mxu0 %v479
  %v514 = vpop.f32.mrb[0].mxu0
  %v515 = vadd.f32 0.0, %v514
  %v516 = vpop.f32.mrb[0].mxu0
  %v517 = vpop.f32.mrb[0].mxu0
  %v518 = vpop.f32.mrb[0].mxu0
  %519 = vdwg.mxu0
  %v520 = vadd.f32 %v478, %v515
  %v521 = vtanh.pop %v520
  %s522 = sadd.s32 %s21, 7
  %v523 = vstv %s522
  %vm524 = vcmp.lt.s32.totalorder %v523, %v43
  %v525 = vsel %vm524, 1, 0
  %526 = vset.pattern.permute.xlu0 0
  %527 = vperm.xlu0 %526, %v525
  %v528 = vpop.permute.xlu0 %527
  %vm529 = vcmp.eq.s32.totalorder %v528, 1
  %v530 = vsel %vm529, %v521, %v475
  %531 = vst [vmem:[#allocation2] sm:$0xff] %v530
  // Predicated region
  $region26: #{review_classifier_rnn.1} parent=0 // pred_check
    %p532 = pneg %p22
  $region27: #{review_classifier_rnn.1} parent=0 // pred_check_branch
    %534 = sbr.rel (%p532) target = $region29
  $region28: #{review_classifier_rnn.1} parent=0 // pred_region
    %v535 = vpack.c.bf16 %v530, %v530
    %v536 = vld [vmem:[%s3] sm:$0xf]
    %v537 = vld [vmem:[%s3 + $0x4] sm:$0xf]
    %v538 = vld [vmem:[%s3 + $0x8] sm:$0xf]
    %v539 = vld [vmem:[%s3 + $0xc] sm:$0xf]
    %v540 = vld [vmem:[%s3 + $0x10] sm:$0xf]
    %v541 = vld [vmem:[%s3 + $0x14] sm:$0xf]
    %v542 = vld [vmem:[%s3 + $0x18] sm:$0xf]
    %v543 = vld [vmem:[%s3 + $0x1c] sm:$0xf]
    %v544 = vld [vmem:[%s3 + $0x20] sm:$0xf]
    %v545 = vld [vmem:[%s3 + $0x24] sm:$0xf]
    %v546 = vld [vmem:[%s3 + $0x28] sm:$0xf]
    %v547 = vld [vmem:[%s3 + $0x2c] sm:$0xf]
    %v548 = vld [vmem:[%s3 + $0x30] sm:$0xf]
    %v549 = vld [vmem:[%s3 + $0x34] sm:$0xf]
    %v550 = vld [vmem:[%s3 + $0x38] sm:$0xf]
    %v551 = vld [vmem:[%s3 + $0x3c] sm:$0xf]
    %v552 = vld [vmem:[%s4] sm:$0x1]
    %v554 = vlaneseq
    %v555 = vshrl.u32 %v554, 7
    %v556 = vsub.s32 0, %v555
    %v557 = vrot.slane %v552, %v556
    %v575 = vunpack.c.l.b16 %v536
    %v576 = vunpack.c.l.b16 %v537
    %v577 = vunpack.c.l.b16 %v538
    %v578 = vunpack.c.l.b16 %v539
    %v579 = vunpack.c.l.b16 %v540
    %v580 = vunpack.c.l.b16 %v541
    %v581 = vunpack.c.l.b16 %v542
    %v582 = vunpack.c.l.b16 %v543
    %v583 = vunpack.c.l.b16 %v544
    %v584 = vunpack.c.l.b16 %v545
    %v585 = vunpack.c.l.b16 %v546
    %v586 = vunpack.c.l.b16 %v547
    %v587 = vunpack.c.l.b16 %v548
    %v588 = vunpack.c.l.b16 %v549
    %v589 = vunpack.c.l.b16 %v550
    %v590 = vunpack.c.l.b16 %v551
    %v591 = vpack.c.b16 %v576, %v575
    %v592 = vpack.c.b16 %v578, %v577
    %v593 = vpack.c.b16 %v580, %v579
    %v594 = vpack.c.b16 %v582, %v581
    %v595 = vpack.c.b16 %v584, %v583
    %v596 = vpack.c.b16 %v586, %v585
    %v597 = vpack.c.b16 %v588, %v587
    %v598 = vpack.c.b16 %v590, %v589
    %607 = vmatprep.subr.bf16.mxu0 0
    %608 = vmatpush1.bf16.msra.mxu0 %v591
    %609 = vmatprep.subr.bf16.mxu0 0
    %610 = vmatpush1.bf16.msra.mxu0 %v592
    %611 = vmatprep.subr.bf16.mxu0 0
    %612 = vmatpush1.bf16.msra.mxu0 %v593
    %613 = vmatprep.subr.bf16.mxu0 0
    %614 = vmatpush1.bf16.msra.mxu0 %v594
    %615 = vmatprep.subr.bf16.mxu0 0
    %616 = vmatpush1.bf16.msra.mxu0 %v595
    %617 = vmatprep.subr.bf16.mxu0 0
    %618 = vmatpush1.bf16.msra.mxu0 %v596
    %619 = vmatprep.subr.bf16.mxu0 0
    %620 = vmatpush1.bf16.msra.mxu0 %v597
    %621 = vmatprep.subr.bf16.mxu0 0
    %622 = vmatpush1.bf16.msra.mxu0 %v598
    %623 = vmatprep.subr.bf16.mxu0 0
    %624 = vmatpush1.bf16.msra.mxu0 0
    %625 = vmatprep.subr.bf16.mxu0 0
    %626 = vmatpush1.bf16.msra.mxu0 0
    %627 = vmatprep.subr.bf16.mxu0 0
    %628 = vmatpush1.bf16.msra.mxu0 0
    %629 = vmatprep.subr.bf16.mxu0 0
    %630 = vmatpush1.bf16.msra.mxu0 0
    %631 = vmatprep.subr.bf16.mxu0 0
    %632 = vmatpush1.bf16.msra.mxu0 0
    %633 = vmatprep.subr.bf16.mxu0 0
    %634 = vmatpush1.bf16.msra.mxu0 0
    %635 = vmatprep.subr.bf16.mxu0 0
    %636 = vmatpush1.bf16.msra.mxu0 0
    %637 = vmatprep.subr.bf16.mxu0 0
    %638 = vmatpush1.bf16.msra.mxu0 0
    %639 = vmatprep.mubr.bf16.mxu0 0
    %640 = vmatmul.mubr.bf16.gmra.mrb[0].mxu0 %v535
    %v641 = vpop.f32.mrb[0].mxu0
    %v642 = vadd.f32 %v557, %v641
    %v643 = vpop.f32.mrb[0].mxu0
    %v644 = vpop.f32.mrb[0].mxu0
    %v645 = vpop.f32.mrb[0].mxu0
    %646 = vdwg.mxu0
    %647 = vst [vmem:[%s5] sm:$0xff] %v642
  $region29: #{review_classifier_rnn.1} parent=0 // pred_fallthru
    _
  // Predicated region
  $region30: #{review_classifier_rnn.1} parent=0 // pred_check
    _
  $region31: #{review_classifier_rnn.1} parent=0 // pred_check_branch
    %649 = sbr.rel (0) target = $region33
  $region32: #{review_classifier_rnn.1} parent=0 // pred_region
    _
  $region33: #{review_classifier_rnn.1} parent=0 // pred_fallthru
    _
  // Predicated region
  $region34: #{review_classifier_rnn.1} parent=0 // pred_check
    _
  $region35: #{review_classifier_rnn.1} parent=0 // pred_check_branch
    %651 = sbr.rel (0) target = $region37
  $region36: #{review_classifier_rnn.1} parent=0 // pred_region
    _
  $region37: #{review_classifier_rnn.1} parent=0 // pred_fallthru
    _

</llo_original>
